<compile_context>
chip_gen: v7x
topology: tpu7x:2x2x1
jax: 0.10.0
libtpu: 0.0.40
codegen_flags: <defaults>
</compile_context>

<pallas_src>
import functools

import numpy as np
import jax
import jax.numpy as jnp
from jax.experimental import pallas as pl
from jax.experimental.pallas import tpu as pltpu

_DEFAULT_BLOCK_ROWS = 256  # rows (of C elements) per grid step; multiple of 8


@functools.lru_cache(maxsize=None)
def _chunk_width():
    """Lane-chunk width: 256 feeds the 256x256 MXU on v6e/v7x, 128 on v5e/older."""
    try:
        kind = jax.devices()[0].device_kind.lower()
    except Exception:
        return 128
    return 256 if ("v6" in kind or "v7" in kind) else 128


@functools.lru_cache(maxsize=None)
def _gamma_consts(gamma, C, TR):
    """Host-precomputed gamma-power matrices (no in-kernel transcendentals).

    G    (C, C): G[c', c] = gamma^(c'-c) for c' >= c else 0   (intra-row suffix sum)
    gcar (1, C): gamma^(C-c)                                   (carry scaling per column)
    Qb   (TR,TR): Qb[m, j] = (gamma^C)^(j-m-1) for j > m else 0 (intra-block row carry)
    powv (TR,1): (gamma^C)^(TR-1-m)                             (cross-block carry weight)
    Exponents are masked to be non-negative so gamma=0 / tiny gamma never yields inf/nan.
    """
    g = np.float64(gamma)
    c = np.arange(C)
    dcc = c[:, None] - c[None, :]
    G = np.where(dcc >= 0, np.power(g, np.maximum(dcc, 0)), 0.0).astype(np.float32)
    gcar = np.power(g, (C - c).astype(np.float64)).astype(np.float32).reshape(1, C)

    gC = np.float64(float(g ** C))
    m = np.arange(TR)
    dkm = m[None, :] - m[:, None] - 1
    Qb = np.where(dkm >= 0, np.power(gC, np.maximum(dkm, 0)), 0.0).astype(np.float32)
    powv = np.power(gC, (TR - 1 - m).astype(np.float64)).astype(np.float32).reshape(TR, 1)
    return (jnp.asarray(G), jnp.asarray(gcar), jnp.asarray(Qb), jnp.asarray(powv))


def _make_kernel(T, NB, TR, ent_coef, has_entropy, gC):
    inv_T = 1.0 / float(T)
    # torch .std() is unbiased (ddof=1); T=1 gives nan in torch as well.
    inv_Tm1 = 1.0 / float(max(T - 1, 1))
    n_data = 4 if has_entropy else 3

    def kernel(*refs):
        data = refs[:n_data]                       # (TR, C) blocks, zero padded
        G_ref, gcar_ref, Qb_ref, pow_ref = refs[n_data:n_data + 4]
        loss_ref = refs[n_data + 4]                # (1, 1) output
        scratch = refs[n_data + 5:]                # (1, 1) VMEM accumulators
        carry, s_d, s_dd, s_ld, s_l, s_lv = scratch[:6]
        s_e = scratch[6] if has_entropy else None

        i = pl.program_id(0)                       # i=0 processes the LAST time block

        @pl.when(i == 0)
        def _init():
            for ref in scratch:
                ref[...] = jnp.zeros_like(ref)

        r = data[0][...]
        v = data[1][...]
        lp = data[2][...]

        # Intra-row discounted suffix sum on the MXU:
        #   local[m, c] = sum_{c' >= c} gamma^(c'-c) * r[m, c']
        local = jnp.dot(r, G_ref[...], preferred_element_type=jnp.float32)   # (TR, C)

        # Cross-row carry: dnext[m] = discounted suffix sum referenced to the
        # start of row m+1 (rows after this block arrive via the (1,1) carry
        # scalar written by the previously processed, later-in-time block).
        h = local[:, 0:1]                                                     # (TR, 1)
        if TR > 1:
            dnext = jnp.dot(Qb_ref[...], h, preferred_element_type=jnp.float32)
            dnext = dnext + pow_ref[...] * carry[...]                          # (TR, 1)
        else:
            dnext = pow_ref[...] * carry[...]
        carry[...] = h[0:1, :] + gC * dnext[0:1, :]   # carry-out = D at block start

        disc = local + dnext * gcar_ref[...]                                   # (TR, C)

        # Fused epilogue: raw streaming sums only.  Padded disc / lp / v / ent
        # are exactly zero, so no mask and no (TR,C) intermediates are needed.
        s_d[...] = s_d[...] + jnp.sum(disc, keepdims=True)
        s_dd[...] = s_dd[...] + jnp.sum(disc * disc, keepdims=True)
        s_ld[...] = s_ld[...] + jnp.sum(lp * disc, keepdims=True)
        s_l[...] = s_l[...] + jnp.sum(lp, keepdims=True)
        s_lv[...] = s_lv[...] + jnp.sum(lp * v, keepdims=True)
        if has_entropy:
            s_e[...] = s_e[...] + jnp.sum(data[3][...], keepdims=True)

        @pl.when(i == NB - 1)
        def _finalize():
            Sd = s_d[...]
            mean = Sd * inv_T
            var = (s_dd[...] - Sd * mean) * inv_Tm1     # unbiased, matches torch .std()
            inv_std = jax.lax.rsqrt(var)                # EUP
            acc = inv_std * (s_ld[...] - mean * s_l[...]) - s_lv[...]
            if has_entropy:
                acc = acc + ent_coef * s_e[...]
            loss_ref[...] = -(acc * inv_T)

    return kernel


@functools.lru_cache(maxsize=None)
def _build_actor_loss(T, C, TR, NB, R_pad, gamma, ent_coef, has_entropy):
    G, gcar, Qb, powv = _gamma_consts(gamma, C, TR)
    gC = float(np.float64(gamma) ** C)
    kernel = _make_kernel(T, NB, TR, float(ent_coef), has_entropy, gC)

    n_data = 4 if has_entropy else 3
    data_spec = pl.BlockSpec((TR, C), lambda i: (NB - 1 - i, 0))   # reverse time order
    const_specs = [
        pl.BlockSpec((C, C), lambda i: (0, 0)),
        pl.BlockSpec((1, C), lambda i: (0, 0)),
        pl.BlockSpec((TR, TR), lambda i: (0, 0)),
        pl.BlockSpec((TR, 1), lambda i: (0, 0)),
    ]
    scratch_shapes = [pltpu.VMEM((1, 1), jnp.float32)
                      for _ in range(7 if has_entropy else 6)]

    # VMEM budget: double-buffered data blocks + gamma constants + headroom
    # for local/disc/products.  Bounded and independent of T.
    blk = TR * C * 4
    vmem_est = (n_data * 2 * blk
                + 2 * (C * C + C + TR * TR + TR) * 4
                + 8 * blk
                + (1 << 20))
    vmem_limit = int(min(64 << 20, max(vmem_est, 32 << 20)))

    pallas_fn = pl.pallas_call(
        kernel,
        out_shape=jax.ShapeDtypeStruct((1, 1), jnp.float32),
        grid_spec=pltpu.PrefetchScalarGridSpec(
            num_scalar_prefetch=0,
            grid=(NB,),
            in_specs=[data_spec] * n_data + const_specs,
            out_specs=pl.BlockSpec((1, 1), lambda i: (0, 0)),
            scratch_shapes=scratch_shapes),
        compiler_params=pltpu.CompilerParams(
            dimension_semantics=("arbitrary",),     # sequential reverse carry
            vmem_limit_bytes=vmem_limit),
    )

    Tp = R_pad * C

    def run(*flat):
        def prep(x):
            x = x.reshape(-1).astype(jnp.float32)
            if Tp != T:
                x = jnp.pad(x, (0, Tp - T))
            return x.reshape(R_pad, C)
        args = [prep(a) for a in flat] + [G, gcar, Qb, powv]
        return pallas_fn(*args)[0, 0]

    return jax.jit(run)


def _entropy_present(entropies):
    """Static (no device sync) equivalent of torch's `if len(entropies):`."""
    if entropies is None:
        return False
    if isinstance(entropies, (list, tuple)):
        return len(entropies) > 0
    shape = np.shape(entropies)
    return int(np.prod(shape, dtype=np.int64)) > 0


def actor_loss(rewards, values, policies, log_probs, entropies=(),
               ent_coef=0.5, gamma=0.99, block_rows=_DEFAULT_BLOCK_ROWS):
    """JAX/Pallas equivalent of ActorLoss.forward (`policies` unused, as in torch)."""
    del policies
    rewards = jnp.asarray(rewards, jnp.float32).reshape(-1)
    values = jnp.asarray(values, jnp.float32).reshape(-1)
    log_probs = jnp.asarray(log_probs, jnp.float32).reshape(-1)
    T = int(rewards.shape[0])

    has_entropy = _entropy_present(entropies)

    C = _chunk_width()
    R = max(1, -(-T // C))                        # ceil(T / C) lane-chunk rows
    if R <= block_rows:
        TR, NB, R_pad = R, 1, R                   # single block: full (R, C) tile
    else:
        TR = max(8, (int(block_rows) // 8) * 8)   # sublane-aligned row block
        NB = -(-R // TR)
        R_pad = NB * TR

    fn = _build_actor_loss(T, C, TR, NB, R_pad, float(gamma),
                           float(ent_coef), has_entropy)
    args = (rewards, values, log_probs)
    if has_entropy:
        args = args + (jnp.asarray(entropies, jnp.float32).reshape(-1),)
    return fn(*args)


def _actor_loss_ref(rewards, values, log_probs, entropies, ent_coef, gamma):
    """NumPy (float64) reference mirroring the PyTorch code."""
    r = np.asarray(rewards, np.float64)
    v = np.asarray(values, np.float64)
    lp = np.asarray(log_probs, np.float64)
    T = r.shape[0]
    disc = np.zeros(T, np.float64)
    val = 0.0
    for i in reversed(range(T)):
        val = r[i] + gamma * val
        disc[i] = val
    out = disc - disc.mean()
    out = out / disc.std(ddof=1)          # torch unbiased std
    adv = out - v
    if entropies is not None and np.asarray(entropies).size:
        e = np.asarray(entropies, np.float64)
        return float(-(lp * adv + ent_coef * e).mean())
    return float(-(lp * adv).mean())


if __name__ == "__main__":
    base_key = jax.random.PRNGKey(0)

    def run_case(T, with_ent, block_rows=_DEFAULT_BLOCK_ROWS):
        key = jax.random.fold_in(base_key, 2 * T + int(with_ent))
        k1, k2, k3, k4 = jax.random.split(key, 4)
        rewards = jax.random.uniform(k1, (T,), jnp.float32)
        values = jax.random.normal(k2, (T,), jnp.float32) * 0.1
        log_probs = -jax.random.uniform(k3, (T,), jnp.float32)
        entropies = jax.random.uniform(k4, (T,), jnp.float32) if with_ent else None
        policies = jnp.zeros((T,), jnp.float32)   # unused by forward

        loss = actor_loss(rewards, values, policies, log_probs, entropies,
                          ent_coef=0.5, gamma=0.99, block_rows=block_rows)
        loss = jax.block_until_ready(loss)
        ref = _actor_loss_ref(np.asarray(rewards), np.asarray(values),
                              np.asarray(log_probs),
                              None if entropies is None else np.asarray(entropies),
                              0.5, 0.99)
        assert np.allclose(np.asarray(loss), ref, rtol=5e-3, atol=2e-4), \
            (T, with_ent, block_rows, float(loss), ref)

    run_case(8, True)                     # single tile, with entropies
    run_case(8, False)                    # specialized no-entropy kernel
    run_case(300, True)                   # multi lane-chunk, single row block
    run_case(2500, True, block_rows=8)    # multi row-block: reverse-grid carry
    run_case(2500, False, block_rows=8)   # same, no-entropy path
    print("KERNEL_OK")
</pallas_src>

<mosaic_0001>
module attributes {stable_mosaic.version = 11 : i64} {
  func.func @kernel(%arg0: i32, %arg1: memref<1x128xf32, #tpu.memory_space<vmem>>, %arg2: memref<1x128xf32, #tpu.memory_space<vmem>>, %arg3: memref<1x128xf32, #tpu.memory_space<vmem>>, %arg4: memref<1x128xf32, #tpu.memory_space<vmem>>, %arg5: memref<128x128xf32, #tpu.memory_space<vmem>>, %arg6: memref<1x128xf32, #tpu.memory_space<vmem>>, %arg7: memref<1x1xf32, #tpu.memory_space<vmem>>, %arg8: memref<1x1xf32, #tpu.memory_space<vmem>>, %arg9: memref<1x1xf32, #tpu.memory_space<vmem>>, %arg10: memref<1x1xf32, #tpu.memory_space<vmem>>, %arg11: memref<1x1xf32, #tpu.memory_space<vmem>>, %arg12: memref<1x1xf32, #tpu.memory_space<vmem>>, %arg13: memref<1x1xf32, #tpu.memory_space<vmem>>, %arg14: memref<1x1xf32, #tpu.memory_space<vmem>>, %arg15: memref<1x1xf32, #tpu.memory_space<vmem>>, %arg16: memref<1x1xf32, #tpu.memory_space<vmem>>) attributes {dimension_semantics = [#tpu.dimension_semantics<arbitrary>], iteration_bounds = array<i64: 1>, scalar_prefetch = 0 : i64, scratch_operands = 7 : i64, tpu.core_type = #tpu.core_type<tc>, window_params = [{transform_indices = @transform_0, window_bounds = array<i64: 1, 128>}, {transform_indices = @transform_1, window_bounds = array<i64: 1, 128>}, {transform_indices = @transform_2, window_bounds = array<i64: 1, 128>}, {transform_indices = @transform_3, window_bounds = array<i64: 1, 128>}, {pipeline_mode = #tpu.pipeline_mode<synchronous>, transform_indices = @transform_4, window_bounds = array<i64: 128, 128>}, {pipeline_mode = #tpu.pipeline_mode<synchronous>, transform_indices = @transform_5, window_bounds = array<i64: 1, 128>}, {pipeline_mode = #tpu.pipeline_mode<synchronous>, transform_indices = @transform_6, window_bounds = array<i64: 1, 1>}, {pipeline_mode = #tpu.pipeline_mode<synchronous>, transform_indices = @transform_7, window_bounds = array<i64: 1, 1>}, {pipeline_mode = #tpu.pipeline_mode<synchronous>, transform_indices = @transform_8, window_bounds = array<i64: 1, 1>}]} {
    %c0_i32 = arith.constant 0 : i32
    %0 = arith.cmpi eq, %arg0, %c0_i32 : i32
    %1 = arith.extui %0 : i1 to i32
    %c0_i32_0 = arith.constant 0 : i32
    %2 = arith.cmpi ne, %1, %c0_i32_0 : i32
    scf.if %2 {
      %cst_51 = arith.constant 0.000000e+00 : f32
      %75 = vector.broadcast %cst_51 : f32 to vector<1x1xf32>
      %c0_52 = arith.constant 0 : index
      %c0_53 = arith.constant 0 : index
      %76 = vector.load %arg10[%c0_52, %c0_53] : memref<1x1xf32, #tpu.memory_space<vmem>>, vector<1x1xf32>
      tpu.vector_store %arg10[%c0_52, %c0_53], %75 {strides = array<i32>} : memref<1x1xf32, #tpu.memory_space<vmem>>, vector<1x1xf32>,
      %cst_54 = arith.constant 0.000000e+00 : f32
      %77 = vector.broadcast %cst_54 : f32 to vector<1x1xf32>
      %c0_55 = arith.constant 0 : index
      %c0_56 = arith.constant 0 : index
      %78 = vector.load %arg11[%c0_55, %c0_56] : memref<1x1xf32, #tpu.memory_space<vmem>>, vector<1x1xf32>
      tpu.vector_store %arg11[%c0_55, %c0_56], %77 {strides = array<i32>} : memref<1x1xf32, #tpu.memory_space<vmem>>, vector<1x1xf32>,
      %cst_57 = arith.constant 0.000000e+00 : f32
      %79 = vector.broadcast %cst_57 : f32 to vector<1x1xf32>
      %c0_58 = arith.constant 0 : index
      %c0_59 = arith.constant 0 : index
      %80 = vector.load %arg12[%c0_58, %c0_59] : memref<1x1xf32, #tpu.memory_space<vmem>>, vector<1x1xf32>
      tpu.vector_store %arg12[%c0_58, %c0_59], %79 {strides = array<i32>} : memref<1x1xf32, #tpu.memory_space<vmem>>, vector<1x1xf32>,
      %cst_60 = arith.constant 0.000000e+00 : f32
      %81 = vector.broadcast %cst_60 : f32 to vector<1x1xf32>
      %c0_61 = arith.constant 0 : index
      %c0_62 = arith.constant 0 : index
      %82 = vector.load %arg13[%c0_61, %c0_62] : memref<1x1xf32, #tpu.memory_space<vmem>>, vector<1x1xf32>
      tpu.vector_store %arg13[%c0_61, %c0_62], %81 {strides = array<i32>} : memref<1x1xf32, #tpu.memory_space<vmem>>, vector<1x1xf32>,
      %cst_63 = arith.constant 0.000000e+00 : f32
      %83 = vector.broadcast %cst_63 : f32 to vector<1x1xf32>
      %c0_64 = arith.constant 0 : index
      %c0_65 = arith.constant 0 : index
      %84 = vector.load %arg14[%c0_64, %c0_65] : memref<1x1xf32, #tpu.memory_space<vmem>>, vector<1x1xf32>
      tpu.vector_store %arg14[%c0_64, %c0_65], %83 {strides = array<i32>} : memref<1x1xf32, #tpu.memory_space<vmem>>, vector<1x1xf32>,
      %cst_66 = arith.constant 0.000000e+00 : f32
      %85 = vector.broadcast %cst_66 : f32 to vector<1x1xf32>
      %c0_67 = arith.constant 0 : index
      %c0_68 = arith.constant 0 : index
      %86 = vector.load %arg15[%c0_67, %c0_68] : memref<1x1xf32, #tpu.memory_space<vmem>>, vector<1x1xf32>
      tpu.vector_store %arg15[%c0_67, %c0_68], %85 {strides = array<i32>} : memref<1x1xf32, #tpu.memory_space<vmem>>, vector<1x1xf32>,
      %cst_69 = arith.constant 0.000000e+00 : f32
      %87 = vector.broadcast %cst_69 : f32 to vector<1x1xf32>
      %c0_70 = arith.constant 0 : index
      %c0_71 = arith.constant 0 : index
      %88 = vector.load %arg16[%c0_70, %c0_71] : memref<1x1xf32, #tpu.memory_space<vmem>>, vector<1x1xf32>
      tpu.vector_store %arg16[%c0_70, %c0_71], %87 {strides = array<i32>} : memref<1x1xf32, #tpu.memory_space<vmem>>, vector<1x1xf32>,
    } else {
    }
    %c0 = arith.constant 0 : index
    %c0_1 = arith.constant 0 : index
    %3 = vector.load %arg1[%c0, %c0_1] : memref<1x128xf32, #tpu.memory_space<vmem>>, vector<1x128xf32>
    %c0_2 = arith.constant 0 : index
    %c0_3 = arith.constant 0 : index
    %4 = vector.load %arg2[%c0_2, %c0_3] : memref<1x128xf32, #tpu.memory_space<vmem>>, vector<1x128xf32>
    %c0_4 = arith.constant 0 : index
    %c0_5 = arith.constant 0 : index
    %5 = vector.load %arg3[%c0_4, %c0_5] : memref<1x128xf32, #tpu.memory_space<vmem>>, vector<1x128xf32>
    %c0_6 = arith.constant 0 : index
    %c0_7 = arith.constant 0 : index
    %6 = vector.load %arg5[%c0_6, %c0_7] : memref<128x128xf32, #tpu.memory_space<vmem>>, vector<128x128xf32>
    %cst = arith.constant dense<0.000000e+00> : vector<1x128xf32>
    %7 = tpu.matmul %3, %6, %cst {dimension_numbers = #tpu.dot_dimension_numbers<[1], [0], [0], [1], [0, 0, 1, 1], [], []>} : vector<1x128xf32>, vector<128x128xf32>, vector<1x128xf32> -> vector<1x128xf32>
    %8 = vector.extract_strided_slice %7 {offsets = [0, 0], sizes = [1, 1], strides = [1, 1]} : vector<1x128xf32> to vector<1x1xf32>
    %c0_8 = arith.constant 0 : index
    %c0_9 = arith.constant 0 : index
    %9 = vector.load %arg8[%c0_8, %c0_9] : memref<1x1xf32, #tpu.memory_space<vmem>>, vector<1x1xf32>
    %c0_10 = arith.constant 0 : index
    %c0_11 = arith.constant 0 : index
    %10 = vector.load %arg10[%c0_10, %c0_11] : memref<1x1xf32, #tpu.memory_space<vmem>>, vector<1x1xf32>
    %11 = arith.mulf %9, %10 : vector<1x1xf32>
    %cst_12 = arith.constant 0.276251674 : f32
    %12 = vector.broadcast %cst_12 : f32 to vector<1x1xf32>
    %13 = arith.mulf %12, %11 : vector<1x1xf32>
    %14 = arith.addf %8, %13 : vector<1x1xf32>
    %c0_13 = arith.constant 0 : index
    %c0_14 = arith.constant 0 : index
    %15 = vector.load %arg10[%c0_13, %c0_14] : memref<1x1xf32, #tpu.memory_space<vmem>>, vector<1x1xf32>
    tpu.vector_store %arg10[%c0_13, %c0_14], %14 {strides = array<i32>} : memref<1x1xf32, #tpu.memory_space<vmem>>, vector<1x1xf32>,
    %c0_15 = arith.constant 0 : index
    %c0_16 = arith.constant 0 : index
    %16 = vector.load %arg6[%c0_15, %c0_16] : memref<1x128xf32, #tpu.memory_space<vmem>>, vector<1x128xf32>
    %17 = vector.broadcast %11 : vector<1x1xf32> to vector<1x128xf32>
    %18 = arith.mulf %17, %16 : vector<1x128xf32>
    %19 = arith.addf %7, %18 : vector<1x128xf32>
    %c0_17 = arith.constant 0 : index
    %c0_18 = arith.constant 0 : index
    %20 = vector.load %arg11[%c0_17, %c0_18] : memref<1x1xf32, #tpu.memory_space<vmem>>, vector<1x1xf32>
    %21 = vector.shape_cast %19 : vector<1x128xf32> to vector<1x1x128xf32>
    %cst_19 = arith.constant dense<0.000000e+00> : vector<1xf32>
    %22 = vector.multi_reduction <add>, %21, %cst_19 [1, 2] : vector<1x1x128xf32> to vector<1xf32>
    %23 = vector.shape_cast %22 : vector<1xf32> to vector<1x1x1xf32>
    %24 = vector.extract %23[0, 0, 0] : f32 from vector<1x1x1xf32>
    %25 = vector.broadcast %24 : f32 to vector<1x1xf32>
    %26 = arith.addf %20, %25 : vector<1x1xf32>
    %c0_20 = arith.constant 0 : index
    %c0_21 = arith.constant 0 : index
    %27 = vector.load %arg11[%c0_20, %c0_21] : memref<1x1xf32, #tpu.memory_space<vmem>>, vector<1x1xf32>
    tpu.vector_store %arg11[%c0_20, %c0_21], %26 {strides = array<i32>} : memref<1x1xf32, #tpu.memory_space<vmem>>, vector<1x1xf32>,
    %c0_22 = arith.constant 0 : index
    %c0_23 = arith.constant 0 : index
    %28 = vector.load %arg12[%c0_22, %c0_23] : memref<1x1xf32, #tpu.memory_space<vmem>>, vector<1x1xf32>
    %29 = arith.mulf %19, %19 : vector<1x128xf32>
    %30 = vector.shape_cast %29 : vector<1x128xf32> to vector<1x1x128xf32>
    %cst_24 = arith.constant dense<0.000000e+00> : vector<1xf32>
    %31 = vector.multi_reduction <add>, %30, %cst_24 [1, 2] : vector<1x1x128xf32> to vector<1xf32>
    %32 = vector.shape_cast %31 : vector<1xf32> to vector<1x1x1xf32>
    %33 = vector.extract %32[0, 0, 0] : f32 from vector<1x1x1xf32>
    %34 = vector.broadcast %33 : f32 to vector<1x1xf32>
    %35 = arith.addf %28, %34 : vector<1x1xf32>
    %c0_25 = arith.constant 0 : index
    %c0_26 = arith.constant 0 : index
    %36 = vector.load %arg12[%c0_25, %c0_26] : memref<1x1xf32, #tpu.memory_space<vmem>>, vector<1x1xf32>
    tpu.vector_store %arg12[%c0_25, %c0_26], %35 {strides = array<i32>} : memref<1x1xf32, #tpu.memory_space<vmem>>, vector<1x1xf32>,
    %c0_27 = arith.constant 0 : index
    %c0_28 = arith.constant 0 : index
    %37 = vector.load %arg13[%c0_27, %c0_28] : memref<1x1xf32, #tpu.memory_space<vmem>>, vector<1x1xf32>
    %38 = arith.mulf %5, %19 : vector<1x128xf32>
    %39 = vector.shape_cast %38 : vector<1x128xf32> to vector<1x1x128xf32>
    %cst_29 = arith.constant dense<0.000000e+00> : vector<1xf32>
    %40 = vector.multi_reduction <add>, %39, %cst_29 [1, 2] : vector<1x1x128xf32> to vector<1xf32>
    %41 = vector.shape_cast %40 : vector<1xf32> to vector<1x1x1xf32>
    %42 = vector.extract %41[0, 0, 0] : f32 from vector<1x1x1xf32>
    %43 = vector.broadcast %42 : f32 to vector<1x1xf32>
    %44 = arith.addf %37, %43 : vector<1x1xf32>
    %c0_30 = arith.constant 0 : index
    %c0_31 = arith.constant 0 : index
    %45 = vector.load %arg13[%c0_30, %c0_31] : memref<1x1xf32, #tpu.memory_space<vmem>>, vector<1x1xf32>
    tpu.vector_store %arg13[%c0_30, %c0_31], %44 {strides = array<i32>} : memref<1x1xf32, #tpu.memory_space<vmem>>, vector<1x1xf32>,
    %c0_32 = arith.constant 0 : index
    %c0_33 = arith.constant 0 : index
    %46 = vector.load %arg14[%c0_32, %c0_33] : memref<1x1xf32, #tpu.memory_space<vmem>>, vector<1x1xf32>
    %47 = vector.shape_cast %5 : vector<1x128xf32> to vector<1x1x128xf32>
    %cst_34 = arith.constant dense<0.000000e+00> : vector<1xf32>
    %48 = vector.multi_reduction <add>, %47, %cst_34 [1, 2] : vector<1x1x128xf32> to vector<1xf32>
    %49 = vector.shape_cast %48 : vector<1xf32> to vector<1x1x1xf32>
    %50 = vector.extract %49[0, 0, 0] : f32 from vector<1x1x1xf32>
    %51 = vector.broadcast %50 : f32 to vector<1x1xf32>
    %52 = arith.addf %46, %51 : vector<1x1xf32>
    %c0_35 = arith.constant 0 : index
    %c0_36 = arith.constant 0 : index
    %53 = vector.load %arg14[%c0_35, %c0_36] : memref<1x1xf32, #tpu.memory_space<vmem>>, vector<1x1xf32>
    tpu.vector_store %arg14[%c0_35, %c0_36], %52 {strides = array<i32>} : memref<1x1xf32, #tpu.memory_space<vmem>>, vector<1x1xf32>,
    %c0_37 = arith.constant 0 : index
    %c0_38 = arith.constant 0 : index
    %54 = vector.load %arg15[%c0_37, %c0_38] : memref<1x1xf32, #tpu.memory_space<vmem>>, vector<1x1xf32>
    %55 = arith.mulf %5, %4 : vector<1x128xf32>
    %56 = vector.shape_cast %55 : vector<1x128xf32> to vector<1x1x128xf32>
    %cst_39 = arith.constant dense<0.000000e+00> : vector<1xf32>
    %57 = vector.multi_reduction <add>, %56, %cst_39 [1, 2] : vector<1x1x128xf32> to vector<1xf32>
    %58 = vector.shape_cast %57 : vector<1xf32> to vector<1x1x1xf32>
    %59 = vector.extract %58[0, 0, 0] : f32 from vector<1x1x1xf32>
    %60 = vector.broadcast %59 : f32 to vector<1x1xf32>
    %61 = arith.addf %54, %60 : vector<1x1xf32>
    %c0_40 = arith.constant 0 : index
    %c0_41 = arith.constant 0 : index
    %62 = vector.load %arg15[%c0_40, %c0_41] : memref<1x1xf32, #tpu.memory_space<vmem>>, vector<1x1xf32>
    tpu.vector_store %arg15[%c0_40, %c0_41], %61 {strides = array<i32>} : memref<1x1xf32, #tpu.memory_space<vmem>>, vector<1x1xf32>,
    %c0_42 = arith.constant 0 : index
    %c0_43 = arith.constant 0 : index
    %63 = vector.load %arg16[%c0_42, %c0_43] : memref<1x1xf32, #tpu.memory_space<vmem>>, vector<1x1xf32>
    %c0_44 = arith.constant 0 : index
    %c0_45 = arith.constant 0 : index
    %64 = vector.load %arg4[%c0_44, %c0_45] : memref<1x128xf32, #tpu.memory_space<vmem>>, vector<1x128xf32>
    %65 = vector.shape_cast %64 : vector<1x128xf32> to vector<1x1x128xf32>
    %cst_46 = arith.constant dense<0.000000e+00> : vector<1xf32>
    %66 = vector.multi_reduction <add>, %65, %cst_46 [1, 2] : vector<1x1x128xf32> to vector<1xf32>
    %67 = vector.shape_cast %66 : vector<1xf32> to vector<1x1x1xf32>
    %68 = vector.extract %67[0, 0, 0] : f32 from vector<1x1x1xf32>
    %69 = vector.broadcast %68 : f32 to vector<1x1xf32>
    %70 = arith.addf %63, %69 : vector<1x1xf32>
    %c0_47 = arith.constant 0 : index
    %c0_48 = arith.constant 0 : index
    %71 = vector.load %arg16[%c0_47, %c0_48] : memref<1x1xf32, #tpu.memory_space<vmem>>, vector<1x1xf32>
    tpu.vector_store %arg16[%c0_47, %c0_48], %70 {strides = array<i32>} : memref<1x1xf32, #tpu.memory_space<vmem>>, vector<1x1xf32>,
    %c0_i32_49 = arith.constant 0 : i32
    %72 = arith.cmpi eq, %arg0, %c0_i32_49 : i32
    %73 = arith.extui %72 : i1 to i32
    %c0_i32_50 = arith.constant 0 : i32
    %74 = arith.cmpi ne, %73, %c0_i32_50 : i32
    scf.if %74 {
      %c0_51 = arith.constant 0 : index
      %c0_52 = arith.constant 0 : index
      %75 = vector.load %arg11[%c0_51, %c0_52] : memref<1x1xf32, #tpu.memory_space<vmem>>, vector<1x1xf32>
      %cst_53 = arith.constant 1.250000e-01 : f32
      %76 = vector.broadcast %cst_53 : f32 to vector<1x1xf32>
      %77 = arith.mulf %75, %76 : vector<1x1xf32>
      %c0_54 = arith.constant 0 : index
      %c0_55 = arith.constant 0 : index
      %78 = vector.load %arg12[%c0_54, %c0_55] : memref<1x1xf32, #tpu.memory_space<vmem>>, vector<1x1xf32>
      %79 = arith.mulf %75, %77 : vector<1x1xf32>
      %80 = arith.subf %78, %79 : vector<1x1xf32>
      %cst_56 = arith.constant 0.142857149 : f32
      %81 = vector.broadcast %cst_56 : f32 to vector<1x1xf32>
      %82 = arith.mulf %80, %81 : vector<1x1xf32>
      %83 = math.rsqrt %82 : vector<1x1xf32>
      %c0_57 = arith.constant 0 : index
      %c0_58 = arith.constant 0 : index
      %84 = vector.load %arg13[%c0_57, %c0_58] : memref<1x1xf32, #tpu.memory_space<vmem>>, vector<1x1xf32>
      %c0_59 = arith.constant 0 : index
      %c0_60 = arith.constant 0 : index
      %85 = vector.load %arg14[%c0_59, %c0_60] : memref<1x1xf32, #tpu.memory_space<vmem>>, vector<1x1xf32>
      %86 = arith.mulf %77, %85 : vector<1x1xf32>
      %87 = arith.subf %84, %86 : vector<1x1xf32>
      %88 = arith.mulf %83, %87 : vector<1x1xf32>
      %c0_61 = arith.constant 0 : index
      %c0_62 = arith.constant 0 : index
      %89 = vector.load %arg15[%c0_61, %c0_62] : memref<1x1xf32, #tpu.memory_space<vmem>>, vector<1x1xf32>
      %90 = arith.subf %88, %89 : vector<1x1xf32>
      %c0_63 = arith.constant 0 : index
      %c0_64 = arith.constant 0 : index
      %91 = vector.load %arg16[%c0_63, %c0_64] : memref<1x1xf32, #tpu.memory_space<vmem>>, vector<1x1xf32>
      %cst_65 = arith.constant 5.000000e-01 : f32
      %92 = vector.broadcast %cst_65 : f32 to vector<1x1xf32>
      %93 = arith.mulf %92, %91 : vector<1x1xf32>
      %94 = arith.addf %90, %93 : vector<1x1xf32>
      %cst_66 = arith.constant 1.250000e-01 : f32
      %95 = vector.broadcast %cst_66 : f32 to vector<1x1xf32>
      %96 = arith.mulf %94, %95 : vector<1x1xf32>
      %cst_67 = arith.constant 0.000000e+00 : f32
      %97 = vector.broadcast %cst_67 : f32 to vector<1x1xf32>
      %98 = arith.subf %97, %96 : vector<1x1xf32>
      %c0_68 = arith.constant 0 : index
      %c0_69 = arith.constant 0 : index
      %99 = vector.load %arg9[%c0_68, %c0_69] : memref<1x1xf32, #tpu.memory_space<vmem>>, vector<1x1xf32>
      tpu.vector_store %arg9[%c0_68, %c0_69], %98 {strides = array<i32>} : memref<1x1xf32, #tpu.memory_space<vmem>>, vector<1x1xf32>,
    } else {
    }
    return
  }
  func.func @transform_0(%arg0: i32) -> (i32, i32) {
    %c0_i32 = arith.constant 0 : i32
    %0 = arith.subi %c0_i32, %arg0 : i32
    %c0_i32_0 = arith.constant 0 : i32
    %c0_i32_1 = arith.constant 0 : i32
    return %0, %c0_i32_0 : i32, i32
  }
  func.func @transform_1(%arg0: i32) -> (i32, i32) {
    %c0_i32 = arith.constant 0 : i32
    %0 = arith.subi %c0_i32, %arg0 : i32
    %c0_i32_0 = arith.constant 0 : i32
    %c0_i32_1 = arith.constant 0 : i32
    return %0, %c0_i32_0 : i32, i32
  }
  func.func @transform_2(%arg0: i32) -> (i32, i32) {
    %c0_i32 = arith.constant 0 : i32
    %0 = arith.subi %c0_i32, %arg0 : i32
    %c0_i32_0 = arith.constant 0 : i32
    %c0_i32_1 = arith.constant 0 : i32
    return %0, %c0_i32_0 : i32, i32
  }
  func.func @transform_3(%arg0: i32) -> (i32, i32) {
    %c0_i32 = arith.constant 0 : i32
    %0 = arith.subi %c0_i32, %arg0 : i32
    %c0_i32_0 = arith.constant 0 : i32
    %c0_i32_1 = arith.constant 0 : i32
    return %0, %c0_i32_0 : i32, i32
  }
  func.func @transform_4(%arg0: i32) -> (i32, i32) {
    %c0_i32 = arith.constant 0 : i32
    %c0_i32_0 = arith.constant 0 : i32
    %c0_i32_1 = arith.constant 0 : i32
    return %c0_i32, %c0_i32_0 : i32, i32
  }
  func.func @transform_5(%arg0: i32) -> (i32, i32) {
    %c0_i32 = arith.constant 0 : i32
    %c0_i32_0 = arith.constant 0 : i32
    %c0_i32_1 = arith.constant 0 : i32
    return %c0_i32, %c0_i32_0 : i32, i32
  }
  func.func @transform_6(%arg0: i32) -> (i32, i32) {
    %c0_i32 = arith.constant 0 : i32
    %c0_i32_0 = arith.constant 0 : i32
    %c0_i32_1 = arith.constant 0 : i32
    return %c0_i32, %c0_i32_0 : i32, i32
  }
  func.func @transform_7(%arg0: i32) -> (i32, i32) {
    %c0_i32 = arith.constant 0 : i32
    %c0_i32_0 = arith.constant 0 : i32
    %c0_i32_1 = arith.constant 0 : i32
    return %c0_i32, %c0_i32_0 : i32, i32
  }
  func.func @transform_8(%arg0: i32) -> (i32, i32) {
    %c0_i32 = arith.constant 0 : i32
    %c0_i32_0 = arith.constant 0 : i32
    %c0_i32_1 = arith.constant 0 : i32
    return %c0_i32, %c0_i32_0 : i32, i32
  }
}

</mosaic_0001>

<llo_original>
// kernel: run.1
$region0: #{run.1}
  #allocation0 [shape = 'u32[]', space=smem, size = 0x4, offset = 0x4, fixed_abs, tag = 'smem constant byte address 0x4 - core index']
  #allocation1 [shape = 'u32[144,128]{1,0:T(1,128)}', space=vmem, size = 0x12000, scoped, tag = 'internal scratch']
  #allocation2 [shape = 'f32[1,1]{1,0:T(1,128)}', space=vmem, size = 0x200, scoped, tag = 'scratch operand']
  #allocation3 [shape = 'f32[1,1]{1,0:T(1,128)}', space=vmem, size = 0x200, scoped, tag = 'scratch operand']
  #allocation4 [shape = 'f32[1,1]{1,0:T(1,128)}', space=vmem, size = 0x200, scoped, tag = 'scratch operand']
  #allocation5 [shape = 'f32[1,1]{1,0:T(1,128)}', space=vmem, size = 0x200, scoped, tag = 'scratch operand']
  #allocation6 [shape = 'f32[1,1]{1,0:T(1,128)}', space=vmem, size = 0x200, scoped, tag = 'scratch operand']
  #allocation7 [shape = 'f32[1,1]{1,0:T(1,128)}', space=vmem, size = 0x200, scoped, tag = 'scratch operand']
  #allocation8 [shape = 'f32[1,1]{1,0:T(1,128)}', space=vmem, size = 0x200, scoped, tag = 'scratch operand']
  #allocation9 [shape = 'f32[1,1]{1,0:T(1,128)S(1)}', space=vmem, size = 0x200, scoped, tag = 'scoped memory for run.1']
  #allocation10 [shape = 'f32[1,1]{1,0:T(1,128)S(1)}', space=vmem, size = 0x200, scoped, tag = 'scoped memory for run.1']
  %s0 = inlined_call_operand.vmem [shape: f32[1,128], index: 0, kind: input, shape index: {}]
  %s1 = inlined_call_operand.vmem [shape: f32[1,128], index: 1, kind: input, shape index: {}]
  %s2 = inlined_call_operand.vmem [shape: f32[1,128], index: 2, kind: input, shape index: {}]
  %s3 = inlined_call_operand.vmem [shape: f32[1,128], index: 3, kind: input, shape index: {}]
  %s4 = inlined_call_operand.hbm [shape: f32[128,128], index: 4, kind: input, shape index: {}]
  %s5 = inlined_call_operand.vmem [shape: f32[1,128], index: 5, kind: input, shape index: {}]
  %s6 = inlined_call_operand.<no memory space> [shape: f32[1,1], index: 6, kind: input, shape index: {}]
  %s7 = inlined_call_operand.<no memory space> [shape: f32[1,1], index: 7, kind: input, shape index: {}]
  %s8 = inlined_call_operand.hbm [shape: f32[1,1], index: 8, kind: output, shape index: {}]
  %s9 = sld [smem:[#allocation0]]
  $region54: #{run.1} parent=0
    _
  %s11 = ssub.s32 1, %s9
  %s12 = scalar_select 0, %s11, %s9
  %v13 = vstv %s6
  %14 = vst [vmem:[#allocation9] sm:$0x1] %v13
  %v15 = vstv %s7
  %16 = vst [vmem:[#allocation10] sm:$0x1] %v15
  $region1: #{run.1} parent=0
    #allocation11 [shape = 'u8[65536]{0}', space=vmem, size = 0x10000, scoped, tag = 'input window, operand 4, single buffered']
    #allocation12 [shape = 's32[1]{0}', space=sflag, size = 0x4, scoped, tag = 'scoped memory for run.1']
    #allocation13 [shape = 's32[1]{0}', space=sflag, size = 0x4, scoped, tag = 'scoped memory for run.1']
    #allocation14 [shape = 'u8[512]{0}', space=vmem, size = 0x400, scoped, tag = 'output window, operand 0, single buffered']
    %17 = vsyncpa [#allocation12], 0
    %18 = vsyncpa [#allocation13], 0
    // Predicated region
    $region2: #{run.1} parent=1 // pred_check
      _
    $region3: #{run.1} parent=1 // pred_check_branch
      %20 = sbr.rel (0) target = $region5
    $region4: #{run.1} parent=1 // pred_region
      %s21 = ssub.s32 0, 0
      %p22 = scmp.lt.s32.totalorder %s21, 0
      %s23 = scalar_select %p22, %s21, 0
      %s24 = scalar_lea.vmem %s0, %s23
      %s25 = ssub.s32 0, 0
    $region5: #{run.1} parent=1 // pred_fallthru
      _
    // Predicated region
    $region6: #{run.1} parent=1 // pred_check
      _
    $region7: #{run.1} parent=1 // pred_check_branch
      %27 = sbr.rel (0) target = $region9
    $region8: #{run.1} parent=1 // pred_region
      %s28 = ssub.s32 0, 0
      %p29 = scmp.lt.s32.totalorder %s28, 0
      %s30 = scalar_select %p29, %s28, 0
      %s31 = scalar_lea.vmem %s1, %s30
      %s32 = ssub.s32 0, 0
    $region9: #{run.1} parent=1 // pred_fallthru
      _
    // Predicated region
    $region10: #{run.1} parent=1 // pred_check
      _
    $region11: #{run.1} parent=1 // pred_check_branch
      %34 = sbr.rel (0) target = $region13
    $region12: #{run.1} parent=1 // pred_region
      %s35 = ssub.s32 0, 0
      %p36 = scmp.lt.s32.totalorder %s35, 0
      %s37 = scalar_select %p36, %s35, 0
      %s38 = scalar_lea.vmem %s2, %s37
      %s39 = ssub.s32 0, 0
    $region13: #{run.1} parent=1 // pred_fallthru
      _
    // Predicated region
    $region14: #{run.1} parent=1 // pred_check
      _
    $region15: #{run.1} parent=1 // pred_check_branch
      %41 = sbr.rel (0) target = $region17
    $region16: #{run.1} parent=1 // pred_region
      %s42 = ssub.s32 0, 0
      %p43 = scmp.lt.s32.totalorder %s42, 0
      %s44 = scalar_select %p43, %s42, 0
      %s45 = scalar_lea.vmem %s3, %s44
      %s46 = ssub.s32 0, 0
    $region17: #{run.1} parent=1 // pred_fallthru
      _
    // Predicated region
    $region18: #{run.1} parent=1 // pred_check
      _
    $region19: #{run.1} parent=1 // pred_check_branch
      %48 = sbr.rel (0) target = $region21
    $region20: #{run.1} parent=1 // pred_region
      %s50 = ssub.s32 2048, 2048
      %51 = vsyncadd [#allocation12], %s50
      %s52 = sshll.u32 [#allocation11], 4
      %s53 = int_to_ptr.vmem [resolvable:$true] %s52
      %58 = dma.hbm_to_vmem [thread:$0]  %s4, 2048, %s53, [#allocation12], 128, 128, 8
    $region21: #{run.1} parent=1 // pred_fallthru
      _
    // Predicated region
    $region22: #{run.1} parent=1 // pred_check
      _
    $region23: #{run.1} parent=1 // pred_check_branch
      %60 = sbr.rel (0) target = $region25
    $region24: #{run.1} parent=1 // pred_region
      _
    $region25: #{run.1} parent=1 // pred_fallthru
      _
    // Predicated region
    $region26: #{run.1} parent=1 // pred_check
      _
    $region27: #{run.1} parent=1 // pred_check_branch
      %62 = sbr.rel (0) target = $region29
    $region28: #{run.1} parent=1 // pred_region
      _
    $region29: #{run.1} parent=1 // pred_fallthru
      _
    // Predicated region
    $region30: #{run.1} parent=1 // pred_check
      _
    $region31: #{run.1} parent=1 // pred_check_branch
      %64 = sbr.rel (0) target = $region33
    $region32: #{run.1} parent=1 // pred_region
      _
    $region33: #{run.1} parent=1 // pred_fallthru
      _
    // Predicated region
    $region34: #{run.1} parent=1 // pred_check
      _
    $region35: #{run.1} parent=1 // pred_check_branch
      %66 = sbr.rel (0) target = $region37
    $region36: #{run.1} parent=1 // pred_region
      %67 = dma.done [#allocation12], 2048
    $region37: #{run.1} parent=1 // pred_fallthru
      _
    %s68 = ssub.s32 0, 0
    %p69 = scmp.lt.s32.totalorder %s68, 0
    %s70 = scalar_select %p69, %s68, 0
    %s71 = scalar_lea.vmem %s0, %s70
    %s72 = ssub.s32 0, 0
    %p73 = scmp.lt.s32.totalorder %s72, 0
    %s74 = scalar_select %p73, %s72, 0
    %s75 = scalar_lea.vmem %s1, %s74
    %s76 = ssub.s32 0, 0
    %p77 = scmp.lt.s32.totalorder %s76, 0
    %s78 = scalar_select %p77, %s76, 0
    %s79 = scalar_lea.vmem %s2, %s78
    %s80 = ssub.s32 0, 0
    %p81 = scmp.lt.s32.totalorder %s80, 0
    %s82 = scalar_select %p81, %s80, 0
    %s83 = scalar_lea.vmem %s3, %s82
    %s84 = ssub.s32 0, 0
    %p85 = scmp.lt.s32.totalorder %s84, 0
    %s86 = scalar_select %p85, %s84, 0
    %s87 = scalar_lea.vmem %s0, %s86
    %s88 = ssub.s32 0, 0
    %s89 = ssub.s32 0, 0
    %p90 = scmp.lt.s32.totalorder %s89, 0
    %s91 = scalar_select %p90, %s89, 0
    %s92 = scalar_lea.vmem %s1, %s91
    %s93 = ssub.s32 0, 0
    %s94 = ssub.s32 0, 0
    %p95 = scmp.lt.s32.totalorder %s94, 0
    %s96 = scalar_select %p95, %s94, 0
    %s97 = scalar_lea.vmem %s2, %s96
    %s98 = ssub.s32 0, 0
    %s99 = ssub.s32 0, 0
    %p100 = scmp.lt.s32.totalorder %s99, 0
    %s101 = scalar_select %p100, %s99, 0
    %s102 = scalar_lea.vmem %s3, %s101
    %s103 = ssub.s32 0, 0
    %p104 = scmp.eq.s32.totalorder 0, 0
    // Predicated region
    $region38: #{run.1} parent=1 // pred_check
      %p105 = pneg %p104
    $region39: #{run.1} parent=1 // pred_check_branch
      %107 = sbr.rel (%p105) target = $region41
    $region40: #{run.1} parent=1 // pred_region
      %vm108 = vcmask 0
      %109 = vst.msk [vmem:[#allocation2] sm:$0x1] %vm108, 0.0
      %110 = vst.msk [vmem:[#allocation3] sm:$0x1] %vm108, 0.0
      %111 = vst.msk [vmem:[#allocation4] sm:$0x1] %vm108, 0.0
      %112 = vst.msk [vmem:[#allocation5] sm:$0x1] %vm108, 0.0
      %113 = vst.msk [vmem:[#allocation6] sm:$0x1] %vm108, 0.0
      %114 = vst.msk [vmem:[#allocation7] sm:$0x1] %vm108, 0.0
      %115 = vst.msk [vmem:[#allocation8] sm:$0x1] %vm108, 0.0
    $region41: #{run.1} parent=1 // pred_fallthru
      _
    %v116 = vld [vmem:[%s87] sm:$0x1]
    %v117 = vld [vmem:[%s92] sm:$0x1]
    %v118 = vld [vmem:[%s97] sm:$0x1]
    %v119 = vld [vmem:[#allocation11] sm:$0xff]
    %v120 = vld [vmem:[#allocation11 + $0x8] sm:$0xff]
    %v121 = vld [vmem:[#allocation11 + $0x10] sm:$0xff]
    %v122 = vld [vmem:[#allocation11 + $0x18] sm:$0xff]
    %v123 = vld [vmem:[#allocation11 + $0x20] sm:$0xff]
    %v124 = vld [vmem:[#allocation11 + $0x28] sm:$0xff]
    %v125 = vld [vmem:[#allocation11 + $0x30] sm:$0xff]
    %v126 = vld [vmem:[#allocation11 + $0x38] sm:$0xff]
    %v127 = vld [vmem:[#allocation11 + $0x40] sm:$0xff]
    %v128 = vld [vmem:[#allocation11 + $0x48] sm:$0xff]
    %v129 = vld [vmem:[#allocation11 + $0x50] sm:$0xff]
    %v130 = vld [vmem:[#allocation11 + $0x58] sm:$0xff]
    %v131 = vld [vmem:[#allocation11 + $0x60] sm:$0xff]
    %v132 = vld [vmem:[#allocation11 + $0x68] sm:$0xff]
    %v133 = vld [vmem:[#allocation11 + $0x70] sm:$0xff]
    %v134 = vld [vmem:[#allocation11 + $0x78] sm:$0xff]
    %135 = vmatprep.subr.mxu0 0.0
    %136 = vmatpush1.msra.mxu0 %v119
    %137 = vmatprep.subr.mxu0 0.0
    %138 = vmatpush1.msra.mxu0 %v120
    %139 = vmatprep.subr.mxu0 0.0
    %140 = vmatpush1.msra.mxu0 %v121
    %141 = vmatprep.subr.mxu0 0.0
    %142 = vmatpush1.msra.mxu0 %v122
    %143 = vmatprep.subr.mxu0 0.0
    %144 = vmatpush1.msra.mxu0 %v123
    %145 = vmatprep.subr.mxu0 0.0
    %146 = vmatpush1.msra.mxu0 %v124
    %147 = vmatprep.subr.mxu0 0.0
    %148 = vmatpush1.msra.mxu0 %v125
    %149 = vmatprep.subr.mxu0 0.0
    %150 = vmatpush1.msra.mxu0 %v126
    %151 = vmatprep.subr.mxu0 0.0
    %152 = vmatpush1.msra.mxu0 %v127
    %153 = vmatprep.subr.mxu0 0.0
    %154 = vmatpush1.msra.mxu0 %v128
    %155 = vmatprep.subr.mxu0 0.0
    %156 = vmatpush1.msra.mxu0 %v129
    %157 = vmatprep.subr.mxu0 0.0
    %158 = vmatpush1.msra.mxu0 %v130
    %159 = vmatprep.subr.mxu0 0.0
    %160 = vmatpush1.msra.mxu0 %v131
    %161 = vmatprep.subr.mxu0 0.0
    %162 = vmatpush1.msra.mxu0 %v132
    %163 = vmatprep.subr.mxu0 0.0
    %164 = vmatpush1.msra.mxu0 %v133
    %165 = vmatprep.subr.mxu0 0.0
    %166 = vmatpush1.msra.mxu0 %v134
    %167 = vmatprep.subr.mxu0 0.0
    %168 = vmatpush1.msra.mxu0 0.0
    %169 = vmatprep.subr.mxu0 0.0
    %170 = vmatpush1.msra.mxu0 0.0
    %171 = vmatprep.subr.mxu0 0.0
    %172 = vmatpush1.msra.mxu0 0.0
    %173 = vmatprep.subr.mxu0 0.0
    %174 = vmatpush1.msra.mxu0 0.0
    %175 = vmatprep.subr.mxu0 0.0
    %176 = vmatpush1.msra.mxu0 0.0
    %177 = vmatprep.subr.mxu0 0.0
    %178 = vmatpush1.msra.mxu0 0.0
    %179 = vmatprep.subr.mxu0 0.0
    %180 = vmatpush1.msra.mxu0 0.0
    %181 = vmatprep.subr.mxu0 0.0
    %182 = vmatpush1.msra.mxu0 0.0
    %183 = vmatprep.subr.mxu0 0.0
    %184 = vmatpush1.msra.mxu0 0.0
    %185 = vmatprep.subr.mxu0 0.0
    %186 = vmatpush1.msra.mxu0 0.0
    %187 = vmatprep.subr.mxu0 0.0
    %188 = vmatpush1.msra.mxu0 0.0
    %189 = vmatprep.subr.mxu0 0.0
    %190 = vmatpush1.msra.mxu0 0.0
    %191 = vmatprep.subr.mxu0 0.0
    %192 = vmatpush1.msra.mxu0 0.0
    %193 = vmatprep.subr.mxu0 0.0
    %194 = vmatpush1.msra.mxu0 0.0
    %195 = vmatprep.subr.mxu0 0.0
    %196 = vmatpush1.msra.mxu0 0.0
    %197 = vmatprep.subr.mxu0 0.0
    %198 = vmatpush1.msra.mxu0 0.0
    %199 = vmatprep.mubr.f32.mxu0 0.0
    %200 = vmatmul.mubr.f32.gmra.mrb[0].mxu0 %v116
    %v201 = vpop.f32.mrb[0].mxu0
    %v202 = vadd.f32 0.0, %v201
    %v203 = vpop.f32.mrb[0].mxu0
    %204 = vdwg.mxu0
    %v205 = vld [vmem:[#allocation10] sm:$0x1]
    %v206 = vld [vmem:[#allocation2] sm:$0x1]
    %v207 = vmul.f32 %v205, %v206
    %v208 = vmul.f32 %v207, 0.27625167
    %v209 = vadd.f32 %v202, %v208
    %vm210 = vcmask 0
    %211 = vst.msk [vmem:[#allocation2] sm:$0x1] %vm210, %v209
    %v212 = vld [vmem:[%s5] sm:$0x1]
    %214 = vset.pattern.permute.xlu0 0
    %215 = vperm.xlu0 %214, %v207
    %v216 = vpop.permute.xlu0 %215
    %v218 = vlaneseq
    %v219 = vshrl.u32 %v218, 7
    %v220 = vsub.s32 0, %v219
    %v221 = vrot.slane %v216, %v220
    %v222 = vmul.f32 %v221, %v212
    %v223 = vadd.f32 %v202, %v222
    %v224 = vld [vmem:[#allocation3] sm:$0x1]
    %vm225 = vcmask 1040384
    %v226 = vsel %vm225, %v223, 0.0
    %227 = vadd.xlane.f32.xlu0 %v226
    %v228 = vpop.xlane.xlu0 %227
    %v229 = vrot.slane %v228, 4
    %v230 = vadd.f32 %v228, %v229
    %v231 = vrot.slane %v230, 2
    %v232 = vadd.f32 %v230, %v231
    %v233 = vrot.slane %v232, 1
    %v234 = vadd.f32 %v232, %v233
    %s235 = vtos %v234
    %v236 = vstv %s235
    %v237 = vadd.f32 %v224, %v236
    %238 = vst.msk [vmem:[#allocation3] sm:$0x1] %vm210, %v237
    %v239 = vld [vmem:[#allocation4] sm:$0x1]
    %v240 = vmul.f32 %v223, %v223
    %v241 = vsel %vm225, %v240, 0.0
    %242 = vadd.xlane.f32.xlu0 %v241
    %v243 = vpop.xlane.xlu0 %242
    %v244 = vrot.slane %v243, 4
    %v245 = vadd.f32 %v243, %v244
    %v246 = vrot.slane %v245, 2
    %v247 = vadd.f32 %v245, %v246
    %v248 = vrot.slane %v247, 1
    %v249 = vadd.f32 %v247, %v248
    %s250 = vtos %v249
    %v251 = vstv %s250
    %v252 = vadd.f32 %v239, %v251
    %253 = vst.msk [vmem:[#allocation4] sm:$0x1] %vm210, %v252
    %v254 = vld [vmem:[#allocation5] sm:$0x1]
    %v255 = vmul.f32 %v118, %v223
    %v256 = vsel %vm225, %v255, 0.0
    %257 = vadd.xlane.f32.xlu0 %v256
    %v258 = vpop.xlane.xlu0 %257
    %v259 = vrot.slane %v258, 4
    %v260 = vadd.f32 %v258, %v259
    %v261 = vrot.slane %v260, 2
    %v262 = vadd.f32 %v260, %v261
    %v263 = vrot.slane %v262, 1
    %v264 = vadd.f32 %v262, %v263
    %s265 = vtos %v264
    %v266 = vstv %s265
    %v267 = vadd.f32 %v254, %v266
    %268 = vst.msk [vmem:[#allocation5] sm:$0x1] %vm210, %v267
    %v269 = vld [vmem:[#allocation6] sm:$0x1]
    %v270 = vsel %vm225, %v118, 0.0
    %271 = vadd.xlane.f32.xlu0 %v270
    %v272 = vpop.xlane.xlu0 %271
    %v273 = vrot.slane %v272, 4
    %v274 = vadd.f32 %v272, %v273
    %v275 = vrot.slane %v274, 2
    %v276 = vadd.f32 %v274, %v275
    %v277 = vrot.slane %v276, 1
    %v278 = vadd.f32 %v276, %v277
    %s279 = vtos %v278
    %v280 = vstv %s279
    %v281 = vadd.f32 %v269, %v280
    %282 = vst.msk [vmem:[#allocation6] sm:$0x1] %vm210, %v281
    %v283 = vld [vmem:[#allocation7] sm:$0x1]
    %v284 = vmul.f32 %v118, %v117
    %v285 = vsel %vm225, %v284, 0.0
    %286 = vadd.xlane.f32.xlu0 %v285
    %v287 = vpop.xlane.xlu0 %286
    %v288 = vrot.slane %v287, 4
    %v289 = vadd.f32 %v287, %v288
    %v290 = vrot.slane %v289, 2
    %v291 = vadd.f32 %v289, %v290
    %v292 = vrot.slane %v291, 1
    %v293 = vadd.f32 %v291, %v292
    %s294 = vtos %v293
    %v295 = vstv %s294
    %v296 = vadd.f32 %v283, %v295
    %297 = vst.msk [vmem:[#allocation7] sm:$0x1] %vm210, %v296
    %v298 = vld [vmem:[#allocation8] sm:$0x1]
    %v299 = vld [vmem:[%s102] sm:$0x1]
    %v300 = vsel %vm225, %v299, 0.0
    %301 = vadd.xlane.f32.xlu0 %v300
    %v302 = vpop.xlane.xlu0 %301
    %v303 = vrot.slane %v302, 4
    %v304 = vadd.f32 %v302, %v303
    %v305 = vrot.slane %v304, 2
    %v306 = vadd.f32 %v304, %v305
    %v307 = vrot.slane %v306, 1
    %v308 = vadd.f32 %v306, %v307
    %s309 = vtos %v308
    %v310 = vstv %s309
    %v311 = vadd.f32 %v298, %v310
    %312 = vst.msk [vmem:[#allocation8] sm:$0x1] %vm210, %v311
    // Predicated region
    $region42: #{run.1} parent=1 // pred_check
      %p313 = pneg %p104
    $region43: #{run.1} parent=1 // pred_check_branch
      %315 = sbr.rel (%p313) target = $region45
    $region44: #{run.1} parent=1 // pred_region
      %v316 = vld [vmem:[#allocation3] sm:$0x1]
      %v317 = vmul.f32 %v316, 0.125
      %v318 = vld [vmem:[#allocation4] sm:$0x1]
      %v319 = vmul.f32 %v316, %v317
      %v320 = vsub.f32 %v318, %v319
      %v321 = vmul.f32 %v320, 0.14285715
      %v322 = vrsqrt.pop %v321
      %v323 = vld [vmem:[#allocation5] sm:$0x1]
      %v324 = vld [vmem:[#allocation6] sm:$0x1]
      %v325 = vmul.f32 %v317, %v324
      %v326 = vsub.f32 %v323, %v325
      %v327 = vmul.f32 %v322, %v326
      %v328 = vld [vmem:[#allocation7] sm:$0x1]
      %v329 = vsub.f32 %v327, %v328
      %v330 = vld [vmem:[#allocation8] sm:$0x1]
      %v331 = vmul.f32 %v330, 0.5
      %v332 = vadd.f32 %v329, %v331
      %v333 = vmul.f32 %v332, 0.125
      %v334 = vsub.f32 0.0, %v333
      %335 = vst.msk [vmem:[#allocation14] sm:$0x1] %vm210, %v334
    $region45: #{run.1} parent=1 // pred_fallthru
      _
    // Predicated region
    $region46: #{run.1} parent=1 // pred_check
      _
    $region47: #{run.1} parent=1 // pred_check_branch
      %337 = sbr.rel (0) target = $region49
    $region48: #{run.1} parent=1 // pred_region
      %s339 = ssub.s32 16, 16
      %340 = vsyncadd [#allocation13], %s339
      %s342 = sshll.u32 [#allocation14], 4
      %s343 = int_to_ptr.vmem [resolvable:$true] %s342
      %345 = dma.vmem_to_hbm [thread:$0]  %s343, 16, %s8, [#allocation13]
    $region49: #{run.1} parent=1 // pred_fallthru
      _
    // Predicated region
    $region50: #{run.1} parent=1 // pred_check
      _
    $region51: #{run.1} parent=1 // pred_check_branch
      %347 = sbr.rel (0) target = $region53
    $region52: #{run.1} parent=1 // pred_region
      %348 = dma.done [#allocation13], 16
    $region53: #{run.1} parent=1 // pred_fallthru
      _
    %349 = vsyncpa [#allocation12], 1
    %350 = vsyncpa [#allocation13], 1

</llo_original>
